<compile_context>
chip_gen: v6e
topology: v6e:2x2x1
jax: 0.10.0
libtpu: 0.0.40
codegen_flags: <defaults>
</compile_context>

<pallas_src>
import functools

import jax
import jax.numpy as jnp
from jax.experimental import pallas as pl
from jax.experimental.pallas import tpu as pltpu

LANE = 128
SUBLANE = 8
MIN_PALLAS_ELEMS = SUBLANE * LANE  # below one (8,128) slab, plain JAX wins


def _round_up(a, b):
    return (a + b - 1) // b * b


def _chip_config():
    """Returns (target input bytes per operand per grid step, #TensorCores)."""
    try:
        kind = jax.devices()[0].device_kind.lower()
    except Exception:
        kind = ""
    if "v7" in kind or "7x" in kind:
        # ~3.2 TB/s HBM makes per-step overhead a bigger fraction -> big tiles,
        # but only 64 MiB VMEM / 32 MiB scoped default: 6 MiB/operand means
        # 24 MiB total double-buffered for the two inputs.  Two TensorCores.
        return 6 << 20, 2
    if "v5 lite" in kind or "v5e" in kind or "v5litepod" in kind:
        # 16 MiB scoped-VMEM default: 2 MiB/operand -> 8 MiB double-buffered.
        return 2 << 20, 1
    # v6e / v5p / v4 / unknown: 32 MiB scoped default -> 4 MiB/operand
    # (16 MiB double-buffered for two inputs).
    return 4 << 20, 1


def _l1_sum_pallas(x, y, n):
    """sum(|x - y|) over the 128-aligned prefix of flat arrays of length n."""
    rows = n // LANE                       # full 128-lane rows (tail handled by caller)
    x2 = x[: rows * LANE].reshape(rows, LANE)
    y2 = y[: rows * LANE].reshape(rows, LANE)

    tile_bytes, ncores = _chip_config()
    itemsize = max(jnp.dtype(x.dtype).itemsize, jnp.dtype(y.dtype).itemsize)
    tile_rows = max(SUBLANE,
                    (tile_bytes // (LANE * itemsize)) // SUBLANE * SUBLANE)
    row_block = min(tile_rows, _round_up(rows, SUBLANE))
    total_blocks = pl.cdiv(rows, row_block)
    if total_blocks < 2:
        ncores = 1                         # nothing to split across cores
    steps_per_core = pl.cdiv(total_blocks, ncores)

    def in_index_map(c, i):
        # Clamp so the DMA never targets a fully out-of-range block; the
        # masked edge path zeroes clamped-duplicate / overhanging rows.
        b = c * steps_per_core + i
        return (jnp.minimum(b, total_blocks - 1), 0)

    def kernel(x_ref, y_ref, out_ref):
        c = pl.program_id(0)
        i = pl.program_id(1)

        @pl.when(i == 0)
        def _():
            out_ref[...] = jnp.zeros_like(out_ref)

        diff = jnp.abs(x_ref[...].astype(jnp.float32) -
                       y_ref[...].astype(jnp.float32))

        def _accum(d):
            # vreg-shaped (8,128) partial sums: pure VPU, no cross-lane reduce.
            out_ref[...] += d.reshape(row_block // SUBLANE, SUBLANE,
                                      LANE).sum(axis=0, keepdims=True)

        logical_block = c * steps_per_core + i
        is_interior = logical_block < (total_blocks - 1)

        @pl.when(is_interior)
        def _():
            _accum(diff)                   # hot path: no mask generation

        @pl.when(jnp.logical_not(is_interior))
        def _():
            # Last real block (possibly partial) or clamped duplicate block.
            row_ids = jax.lax.broadcasted_iota(jnp.int32, (row_block, LANE), 0)
            valid = (logical_block * row_block + row_ids) < rows
            _accum(jnp.where(valid, diff, 0.0))

    if ncores > 1:
        dims = (getattr(pltpu, "CORE_PARALLEL", "parallel"),
                getattr(pltpu, "ARBITRARY", "arbitrary"))
    else:
        dims = ("arbitrary", "arbitrary")

    partials = pl.pallas_call(
        kernel,
        out_shape=jax.ShapeDtypeStruct((ncores, SUBLANE, LANE), jnp.float32),
        grid_spec=pltpu.PrefetchScalarGridSpec(
            num_scalar_prefetch=0,
            grid=(ncores, steps_per_core),
            in_specs=[
                pl.BlockSpec((row_block, LANE), in_index_map),
                pl.BlockSpec((row_block, LANE), in_index_map),
            ],
            # Output block depends only on c -> resident accumulator across i.
            out_specs=pl.BlockSpec((1, SUBLANE, LANE), lambda c, i: (c, 0, 0)),
        ),
        compiler_params=pltpu.CompilerParams(dimension_semantics=dims),
    )(x2, y2)

    # Final (ncores, 8, 128) -> scalar reduction is trivial; leave it to XLA.
    return jnp.sum(partials)


@functools.partial(jax.jit, static_argnames=("reduction",))
def custom_l1_loss(inputs, targets, reduction="mean"):
    # `reduction` is static, so returning None for unsupported modes mirrors
    # the PyTorch module exactly.
    if reduction not in ("mean", "sum"):
        return None

    x = jnp.ravel(inputs)   # .view(-1)
    y = jnp.ravel(targets)
    n = x.shape[0]

    out_dtype = (inputs.dtype
                 if jnp.issubdtype(inputs.dtype, jnp.floating)
                 else jnp.float32)

    if n == 0:
        # torch: mean of empty -> nan, sum of empty -> 0
        return jnp.asarray(jnp.nan if reduction == "mean" else 0.0,
                           dtype=out_dtype)

    if n < MIN_PALLAS_ELEMS:
        # Tiny input: XLA's fused elementwise+reduce beats a kernel launch.
        total = jnp.sum(jnp.abs(x.astype(jnp.float32) - y.astype(jnp.float32)))
    else:
        total = _l1_sum_pallas(x, y, n)
        tail = n % LANE
        if tail:
            # <=127 trailing elements: tiny plain-JAX sum, no full-array pad.
            xt = x[n - tail:].astype(jnp.float32)
            yt = y[n - tail:].astype(jnp.float32)
            total = total + jnp.sum(jnp.abs(xt - yt))

    if reduction == "mean":
        return (total / jnp.float32(n)).astype(out_dtype)
    return total.astype(out_dtype)


if __name__ == "__main__":
    key = jax.random.PRNGKey(0)
    k1, k2, k3, k4, k5, k6 = jax.random.split(key, 6)

    # Primary example: NCHW activations, as the PyTorch module would see.
    x = jax.random.normal(k1, (2, 4, 16, 16), dtype=jnp.float32)
    t = jax.random.normal(k2, (2, 4, 16, 16), dtype=jnp.float32)

    out_mean = custom_l1_loss(x, t, reduction="mean")
    out_sum = custom_l1_loss(x, t, reduction="sum")
    jax.block_until_ready((out_mean, out_sum))

    ref_mean = jnp.mean(jnp.abs(x.ravel() - t.ravel()))
    ref_sum = jnp.sum(jnp.abs(x.ravel() - t.ravel()))
    assert jnp.allclose(out_mean, ref_mean, rtol=1e-5, atol=1e-5)
    assert jnp.allclose(out_sum, ref_sum, rtol=1e-5, atol=1e-3)

    # Larger case (n % 128 == 0, rows not a multiple of 8*tile): exercises the
    # partial last block's masked edge path.
    xb = jax.random.normal(k3, (8, 4, 100, 100), dtype=jnp.float32)
    tb = jax.random.normal(k4, (8, 4, 100, 100), dtype=jnp.float32)
    got_b = custom_l1_loss(xb, tb, reduction="sum")
    jax.block_until_ready(got_b)
    ref_b = jnp.sum(jnp.abs(xb.ravel() - tb.ravel()))
    assert jnp.allclose(got_b, ref_b, rtol=1e-5, atol=1e-2)

    # Ragged case (n % 128 != 0): exercises the aligned-prefix kernel plus the
    # plain-JAX tail sum.
    xc = jax.random.normal(k5, (3, 5, 7, 11), dtype=jnp.float32)
    tc = jax.random.normal(k6, (3, 5, 7, 11), dtype=jnp.float32)
    got_c = custom_l1_loss(xc, tc, reduction="mean")
    jax.block_until_ready(got_c)
    ref_c = jnp.mean(jnp.abs(xc.ravel() - tc.ravel()))
    assert jnp.allclose(got_c, ref_c, rtol=1e-5, atol=1e-5)

    # bf16 case: exercises native-dtype streaming + dtype-aware tile sizing.
    xd = x.astype(jnp.bfloat16)
    td = t.astype(jnp.bfloat16)
    got_d = custom_l1_loss(xd, td, reduction="sum")
    jax.block_until_ready(got_d)
    ref_d = jnp.sum(jnp.abs(xd.astype(jnp.float32) - td.astype(jnp.float32)))
    assert jnp.allclose(got_d.astype(jnp.float32), ref_d, rtol=2e-2)

    print("KERNEL_OK")
</pallas_src>

<mosaic_0001>
module attributes {stable_mosaic.version = 11 : i64} {
  func.func @kernel(%arg0: i32, %arg1: i32, %arg2: memref<16x128xf32, #tpu.memory_space<vmem>>, %arg3: memref<16x128xf32, #tpu.memory_space<vmem>>, %arg4: memref<1x8x128xf32, #tpu.memory_space<vmem>>) attributes {dimension_semantics = [#tpu.dimension_semantics<arbitrary>, #tpu.dimension_semantics<arbitrary>], iteration_bounds = array<i64: 1, 1>, scalar_prefetch = 0 : i64, scratch_operands = 0 : i64, tpu.core_type = #tpu.core_type<tc>, window_params = [{transform_indices = @transform_0, window_bounds = array<i64: 16, 128>}, {transform_indices = @transform_1, window_bounds = array<i64: 16, 128>}, {transform_indices = @transform_2, window_bounds = array<i64: 1, 8, 128>}]} {
    %c0_i32 = arith.constant 0 : i32
    %0 = arith.cmpi eq, %arg1, %c0_i32 : i32
    %1 = arith.extui %0 : i1 to i32
    %c0_i32_0 = arith.constant 0 : i32
    %2 = arith.cmpi ne, %1, %c0_i32_0 : i32
    scf.if %2 {
      %cst = arith.constant 0.000000e+00 : f32
      %15 = vector.broadcast %cst : f32 to vector<1x8x128xf32>
      %c0_7 = arith.constant 0 : index
      %c0_8 = arith.constant 0 : index
      %c0_9 = arith.constant 0 : index
      %16 = vector.load %arg4[%c0_7, %c0_8, %c0_9] : memref<1x8x128xf32, #tpu.memory_space<vmem>>, vector<1x8x128xf32>
      tpu.vector_store %arg4[%c0_7, %c0_8, %c0_9], %15 {strides = array<i32>} : memref<1x8x128xf32, #tpu.memory_space<vmem>>, vector<1x8x128xf32>,
    } else {
    }
    %c0 = arith.constant 0 : index
    %c0_1 = arith.constant 0 : index
    %3 = vector.load %arg2[%c0, %c0_1] : memref<16x128xf32, #tpu.memory_space<vmem>>, vector<16x128xf32>
    %c0_2 = arith.constant 0 : index
    %c0_3 = arith.constant 0 : index
    %4 = vector.load %arg3[%c0_2, %c0_3] : memref<16x128xf32, #tpu.memory_space<vmem>>, vector<16x128xf32>
    %5 = arith.subf %3, %4 : vector<16x128xf32>
    %6 = math.absf %5 : vector<16x128xf32>
    %c1_i32 = arith.constant 1 : i32
    %7 = arith.muli %arg0, %c1_i32 : i32
    %8 = arith.addi %7, %arg1 : i32
    %c0_i32_4 = arith.constant 0 : i32
    %9 = arith.cmpi slt, %8, %c0_i32_4 : i32
    %10 = arith.extui %9 : i1 to i32
    %c0_i32_5 = arith.constant 0 : i32
    %11 = arith.cmpi ne, %10, %c0_i32_5 : i32
    scf.if %11 {
      %c0_7 = arith.constant 0 : index
      %c0_8 = arith.constant 0 : index
      %c0_9 = arith.constant 0 : index
      %15 = vector.load %arg4[%c0_7, %c0_8, %c0_9] : memref<1x8x128xf32, #tpu.memory_space<vmem>>, vector<1x8x128xf32>
      %16 = vector.shape_cast %6 : vector<16x128xf32> to vector<2x8x128xf32>
      %cst = arith.constant dense<0.000000e+00> : vector<8x128xf32>
      %17 = vector.multi_reduction <add>, %16, %cst [0] : vector<2x8x128xf32> to vector<8x128xf32>
      %18 = vector.shape_cast %17 : vector<8x128xf32> to vector<1x8x128xf32>
      %19 = arith.addf %15, %18 : vector<1x8x128xf32>
      %c0_10 = arith.constant 0 : index
      %c0_11 = arith.constant 0 : index
      %c0_12 = arith.constant 0 : index
      %20 = vector.load %arg4[%c0_10, %c0_11, %c0_12] : memref<1x8x128xf32, #tpu.memory_space<vmem>>, vector<1x8x128xf32>
      tpu.vector_store %arg4[%c0_10, %c0_11, %c0_12], %19 {strides = array<i32>} : memref<1x8x128xf32, #tpu.memory_space<vmem>>, vector<1x8x128xf32>,
    } else {
    }
    %true = arith.constant true
    %12 = arith.xori %9, %true : i1
    %13 = arith.extui %12 : i1 to i32
    %c0_i32_6 = arith.constant 0 : i32
    %14 = arith.cmpi ne, %13, %c0_i32_6 : i32
    scf.if %14 {
      %15 = tpu.iota {dimensions = array<i32: 0>} : vector<16x128xi32>
      %c16_i32 = arith.constant 16 : i32
      %16 = arith.muli %8, %c16_i32 : i32
      %17 = vector.broadcast %16 : i32 to vector<16x128xi32>
      %18 = arith.addi %17, %15 : vector<16x128xi32>
      %c16_i32_7 = arith.constant 16 : i32
      %19 = vector.broadcast %c16_i32_7 : i32 to vector<16x128xi32>
      %20 = arith.cmpi slt, %18, %19 : vector<16x128xi32>
      %cst = arith.constant 0.000000e+00 : f32
      %21 = vector.broadcast %cst : f32 to vector<16x128xf32>
      %22 = arith.select %20, %6, %21 : vector<16x128xi1>, vector<16x128xf32>
      %c0_8 = arith.constant 0 : index
      %c0_9 = arith.constant 0 : index
      %c0_10 = arith.constant 0 : index
      %23 = vector.load %arg4[%c0_8, %c0_9, %c0_10] : memref<1x8x128xf32, #tpu.memory_space<vmem>>, vector<1x8x128xf32>
      %24 = vector.shape_cast %22 : vector<16x128xf32> to vector<2x8x128xf32>
      %cst_11 = arith.constant dense<0.000000e+00> : vector<8x128xf32>
      %25 = vector.multi_reduction <add>, %24, %cst_11 [0] : vector<2x8x128xf32> to vector<8x128xf32>
      %26 = vector.shape_cast %25 : vector<8x128xf32> to vector<1x8x128xf32>
      %27 = arith.addf %23, %26 : vector<1x8x128xf32>
      %c0_12 = arith.constant 0 : index
      %c0_13 = arith.constant 0 : index
      %c0_14 = arith.constant 0 : index
      %28 = vector.load %arg4[%c0_12, %c0_13, %c0_14] : memref<1x8x128xf32, #tpu.memory_space<vmem>>, vector<1x8x128xf32>
      tpu.vector_store %arg4[%c0_12, %c0_13, %c0_14], %27 {strides = array<i32>} : memref<1x8x128xf32, #tpu.memory_space<vmem>>, vector<1x8x128xf32>,
    } else {
    }
    return
  }
  func.func @transform_0(%arg0: i32, %arg1: i32) -> (i32, i32) {
    %c1_i32 = arith.constant 1 : i32
    %0 = arith.muli %arg0, %c1_i32 : i32
    %1 = arith.addi %0, %arg1 : i32
    %c0_i32 = arith.constant 0 : i32
    %2 = arith.minsi %1, %c0_i32 : i32
    %c0_i32_0 = arith.constant 0 : i32
    %c0_i32_1 = arith.constant 0 : i32
    return %2, %c0_i32_0 : i32, i32
  }
  func.func @transform_1(%arg0: i32, %arg1: i32) -> (i32, i32) {
    %c1_i32 = arith.constant 1 : i32
    %0 = arith.muli %arg0, %c1_i32 : i32
    %1 = arith.addi %0, %arg1 : i32
    %c0_i32 = arith.constant 0 : i32
    %2 = arith.minsi %1, %c0_i32 : i32
    %c0_i32_0 = arith.constant 0 : i32
    %c0_i32_1 = arith.constant 0 : i32
    return %2, %c0_i32_0 : i32, i32
  }
  func.func @transform_2(%arg0: i32, %arg1: i32) -> (i32, i32, i32) {
    %c0_i32 = arith.constant 0 : i32
    %c0_i32_0 = arith.constant 0 : i32
    %c0_i32_1 = arith.constant 0 : i32
    return %arg0, %c0_i32, %c0_i32_0 : i32, i32, i32
  }
}

</mosaic_0001>

<llo_original>
// kernel: custom_l1_loss.1
$region0: #{custom_l1_loss.1}
  #allocation0 [shape = 'u32[]', space=smem, size = 0x4, offset = 0x4, fixed_abs, tag = 'smem constant byte address 0x4 - core index']
  #allocation1 [shape = 'u32[144,128]{1,0:T(1,128)}', space=vmem, size = 0x12000, scoped, tag = 'internal scratch']
  %s0 = inlined_call_operand.vmem [shape: f32[16,128], index: 0, kind: input, shape index: {}]
  %s1 = inlined_call_operand.vmem [shape: f32[16,128], index: 1, kind: input, shape index: {}]
  %s2 = inlined_call_operand.vmem [shape: f32[1,8,128], index: 2, kind: output, shape index: {}]
  %s3 = sld [smem:[#allocation0]]
  $region30: #{custom_l1_loss.1} parent=0
    _
  %s5 = ssub.s32 1, %s3
  %s6 = scalar_select 0, %s5, %s3
  // Predicated region
  $region2: #{custom_l1_loss.1} parent=0 // pred_check
    _
  $region3: #{custom_l1_loss.1} parent=0 // pred_check_branch
    %8 = sbr.rel (0) target = $region5
  $region4: #{custom_l1_loss.1} parent=0 // pred_region
    %s9 = sadd.s32 0, 0
    %p10 = scmp.lt.s32.totalorder %s9, 0
    %s11 = scalar_select %p10, %s9, 0
    %s12 = smul.u32 2, %s11
    %p13 = scmp.lt.s32.totalorder %s12, 1
    %s14 = scalar_select %p13, %s12, 1
    %s15 = smul.addr %s14, 8
    %s16 = scalar_lea.vmem %s0, %s15
    %s17 = sadd.s32 0, 0
    %p18 = scmp.lt.s32.totalorder %s17, 0
    %s19 = scalar_select %p18, %s17, 0
    %s20 = smul.u32 2, %s19
  $region5: #{custom_l1_loss.1} parent=0 // pred_fallthru
    _
  // Predicated region
  $region6: #{custom_l1_loss.1} parent=0 // pred_check
    _
  $region7: #{custom_l1_loss.1} parent=0 // pred_check_branch
    %22 = sbr.rel (0) target = $region9
  $region8: #{custom_l1_loss.1} parent=0 // pred_region
    %s23 = sadd.s32 0, 0
    %p24 = scmp.lt.s32.totalorder %s23, 0
    %s25 = scalar_select %p24, %s23, 0
    %s26 = smul.u32 2, %s25
    %p27 = scmp.lt.s32.totalorder %s26, 1
    %s28 = scalar_select %p27, %s26, 1
    %s29 = smul.addr %s28, 8
    %s30 = scalar_lea.vmem %s1, %s29
    %s31 = sadd.s32 0, 0
    %p32 = scmp.lt.s32.totalorder %s31, 0
    %s33 = scalar_select %p32, %s31, 0
    %s34 = smul.u32 2, %s33
  $region9: #{custom_l1_loss.1} parent=0 // pred_fallthru
    _
  %s35 = sadd.s32 0, 0
  %p36 = scmp.lt.s32.totalorder %s35, 0
  %s37 = scalar_select %p36, %s35, 0
  %s38 = smul.u32 2, %s37
  %p39 = scmp.lt.s32.totalorder %s38, 1
  %s40 = scalar_select %p39, %s38, 1
  %s41 = smul.addr %s40, 8
  %s42 = scalar_lea.vmem %s0, %s41
  %s43 = sadd.s32 0, 0
  %p44 = scmp.lt.s32.totalorder %s43, 0
  %s45 = scalar_select %p44, %s43, 0
  %s46 = smul.u32 2, %s45
  %p47 = scmp.lt.s32.totalorder %s46, 1
  %s48 = scalar_select %p47, %s46, 1
  %s49 = smul.addr %s48, 8
  %s50 = scalar_lea.vmem %s1, %s49
  %s51 = sadd.s32 0, 0
  %p52 = scmp.lt.s32.totalorder %s51, 0
  %s53 = scalar_select %p52, %s51, 0
  %s54 = smul.u32 2, %s53
  %p55 = scmp.lt.s32.totalorder %s54, 1
  %s56 = scalar_select %p55, %s54, 1
  %s57 = smul.addr %s56, 8
  %s58 = scalar_lea.vmem %s0, %s57
  %s59 = sadd.s32 0, 0
  %p60 = scmp.lt.s32.totalorder %s59, 0
  %s61 = scalar_select %p60, %s59, 0
  %s62 = smul.u32 2, %s61
  %s63 = sadd.s32 0, 0
  %p64 = scmp.lt.s32.totalorder %s63, 0
  %s65 = scalar_select %p64, %s63, 0
  %s66 = smul.u32 2, %s65
  %p67 = scmp.lt.s32.totalorder %s66, 1
  %s68 = scalar_select %p67, %s66, 1
  %s69 = smul.addr %s68, 8
  %s70 = scalar_lea.vmem %s1, %s69
  %s71 = sadd.s32 0, 0
  %p72 = scmp.lt.s32.totalorder %s71, 0
  %s73 = scalar_select %p72, %s71, 0
  %s74 = smul.u32 2, %s73
  %p75 = scmp.eq.s32.totalorder 0, 0
  // Predicated region
  $region10: #{custom_l1_loss.1} parent=0 // pred_check
    %p76 = pneg %p75
  $region11: #{custom_l1_loss.1} parent=0 // pred_check_branch
    %78 = sbr.rel (%p76) target = $region13
  $region12: #{custom_l1_loss.1} parent=0 // pred_region
    %79 = vst [vmem:[%s2] sm:$0xff] 0.0
  $region13: #{custom_l1_loss.1} parent=0 // pred_fallthru
    _
  %v80 = vld [vmem:[%s58] sm:$0xff]
  %v81 = vld [vmem:[%s58 + $0x8] sm:$0xff]
  %v82 = vld [vmem:[%s70] sm:$0xff]
  %v83 = vld [vmem:[%s70 + $0x8] sm:$0xff]
  %v84 = vsub.f32 %v80, %v82
  %v85 = vsub.f32 %v81, %v83
  %v86 = vand.u32 2147483647, %v84
  %v87 = vand.u32 2147483647, %v85
  %s88 = sadd.s32 0, 0
  %p89 = scmp.lt.s32.totalorder %s88, 0
  // Predicated region
  $region14: #{custom_l1_loss.1} parent=0 // pred_check
    %p90 = pneg %p89
  $region15: #{custom_l1_loss.1} parent=0 // pred_check_branch
    %92 = sbr.rel (%p90) target = $region17
  $region16: #{custom_l1_loss.1} parent=0 // pred_region
    %v93 = vld [vmem:[%s2] sm:$0xff]
    %v94 = vadd.f32 %v86, %v87
    %v95 = vadd.f32 %v93, %v94
    %96 = vst [vmem:[%s2] sm:$0xff] %v95
  $region17: #{custom_l1_loss.1} parent=0 // pred_fallthru
    _
  %p97 = scmp.ge.s32.totalorder %s88, 0
  // Predicated region
  $region18: #{custom_l1_loss.1} parent=0 // pred_check
    %p98 = pneg %p97
  $region19: #{custom_l1_loss.1} parent=0 // pred_check_branch
    %100 = sbr.rel (%p98) target = $region21
  $region20: #{custom_l1_loss.1} parent=0 // pred_region
    %v101 = vlaneseq
    %v102 = vshrl.u32 %v101, 7
    %v103 = vadd.s32 %v102, 8
    %s104 = smul.u32 %s88, 16
    %v105 = vstv %s104
    %v106 = vadd.s32 %v105, %v102
    %v107 = vadd.s32 %v105, %v103
    %vm108 = vcmp.lt.s32.totalorder %v106, 16
    %vm109 = vcmp.lt.s32.totalorder %v107, 16
    %v110 = vsel %vm108, %v86, 0.0
    %v111 = vsel %vm109, %v87, 0.0
    %v112 = vld [vmem:[%s2] sm:$0xff]
    %v113 = vadd.f32 %v110, %v111
    %v114 = vadd.f32 %v112, %v113
    %115 = vst [vmem:[%s2] sm:$0xff] %v114
  $region21: #{custom_l1_loss.1} parent=0 // pred_fallthru
    _
  // Predicated region
  $region22: #{custom_l1_loss.1} parent=0 // pred_check
    _
  $region23: #{custom_l1_loss.1} parent=0 // pred_check_branch
    %117 = sbr.rel (0) target = $region25
  $region24: #{custom_l1_loss.1} parent=0 // pred_region
    _
  $region25: #{custom_l1_loss.1} parent=0 // pred_fallthru
    _
  // Predicated region
  $region26: #{custom_l1_loss.1} parent=0 // pred_check
    _
  $region27: #{custom_l1_loss.1} parent=0 // pred_check_branch
    %119 = sbr.rel (0) target = $region29
  $region28: #{custom_l1_loss.1} parent=0 // pred_region
    _
  $region29: #{custom_l1_loss.1} parent=0 // pred_fallthru
    _

</llo_original>
